<compile_context>
chip_gen: v7x
topology: tpu7x:2x2x1
jax: 0.10.0
libtpu: 0.0.40
codegen_flags: <defaults>
</compile_context>

<pallas_src>
import math

import jax
import jax.numpy as jnp
from jax.experimental import pallas as pl
from jax.experimental.pallas import tpu as pltpu


# ----------------------------------------------------------------------------
# generation-dependent configuration
# ----------------------------------------------------------------------------

def _tpu_vmem_capacity_bytes():
    try:
        info = pltpu.get_tpu_info()
        for name in ("vmem_capacity_bytes", "vmem_size_bytes", "vmem_bytes"):
            cap = getattr(info, name, None)
            if cap:
                return int(cap)
    except Exception:
        pass
    return 0  # unknown -> use the conservative configuration


_VMEM_CAP = _tpu_vmem_capacity_bytes()
_BIG_VMEM = _VMEM_CAP >= 100 * 1024 * 1024              # v5e / v6e: 128 MiB
_VMEM_LIMIT = (96 if _BIG_VMEM else 32) * 1024 * 1024   # conservative on v7x
_PREF_TM, _PREF_TN, _PREF_TK = (512, 512, 1024) if _BIG_VMEM else (256, 256, 512)
_PREF_TM_FUSED = 1024 if _BIG_VMEM else 512              # rows for linear_add_ln


def _pick_tile(dim, preferred, align):
    """Largest tile <= preferred that is a multiple of `align` and divides `dim`.

    Falls back to the full extent (always a legal block shape) instead of
    emitting mis-aligned or degenerate tiles.
    """
    if dim <= preferred:
        return dim
    t = (preferred // align) * align
    while t >= align:
        if dim % t == 0:
            return t
        t -= align
    return dim


# ----------------------------------------------------------------------------
# Pallas kernels
# ----------------------------------------------------------------------------

def _make_linear_kernel(act):
    """Tiled y = x @ w + b with optional fused gelu / elu epilogue (f32)."""
    def kernel(x_ref, w_ref, b_ref, o_ref, acc_ref):
        @pl.when(pl.program_id(2) == 0)
        def _init():
            acc_ref[...] = jnp.zeros_like(acc_ref)

        acc_ref[...] += jnp.dot(x_ref[...], w_ref[...],
                                preferred_element_type=jnp.float32)

        @pl.when(pl.program_id(2) == pl.num_programs(2) - 1)
        def _finalize():
            y = acc_ref[...] + b_ref[...]
            if act == "gelu":
                # tanh approximation of GELU
                y = 0.5 * y * (1.0 + jnp.tanh(0.7978845608028654 *
                                              (y + 0.044715 * y * y * y)))
            elif act == "elu":
                y = jnp.where(y > 0.0, y, jnp.expm1(jnp.minimum(y, 0.0)))
            o_ref[...] = y.astype(o_ref.dtype)
    return kernel


def linear(x, w, b, act=None, out_dtype=jnp.bfloat16):
    M, K = x.shape
    N = w.shape[1]
    tm = _pick_tile(M, _PREF_TM, 8)
    tn = _pick_tile(N, _PREF_TN, 128)
    tk = _pick_tile(K, _PREF_TK, 128)
    return pl.pallas_call(
        _make_linear_kernel(act),
        out_shape=jax.ShapeDtypeStruct((M, N), out_dtype),
        grid=(M // tm, N // tn, K // tk),
        in_specs=[pl.BlockSpec((tm, tk), lambda i, j, k: (i, k)),
                  pl.BlockSpec((tk, tn), lambda i, j, k: (k, j)),
                  pl.BlockSpec((1, tn), lambda i, j, k: (0, j))],
        out_specs=pl.BlockSpec((tm, tn), lambda i, j, k: (i, j)),
        scratch_shapes=[pltpu.VMEM((tm, tn), jnp.float32)],
        compiler_params=pltpu.CompilerParams(
            dimension_semantics=("parallel", "parallel", "arbitrary"),
            vmem_limit_bytes=_VMEM_LIMIT),
    )(x, w, b.reshape(1, N).astype(jnp.float32))


def _linear_res_ln_kernel(x_ref, w_ref, b_ref, res_ref, g_ref, beta_ref,
                          o_ref, acc_ref):
    """y = LayerNorm(residual + x @ w + b), tiled over (rows, K)."""
    @pl.when(pl.program_id(1) == 0)
    def _init():
        acc_ref[...] = jnp.zeros_like(acc_ref)

    acc_ref[...] += jnp.dot(x_ref[...], w_ref[...],
                            preferred_element_type=jnp.float32)

    @pl.when(pl.program_id(1) == pl.num_programs(1) - 1)
    def _finalize():
        y = acc_ref[...] + b_ref[...] + res_ref[...].astype(jnp.float32)
        mu = jnp.mean(y, axis=-1, keepdims=True)
        var = jnp.mean((y - mu) ** 2, axis=-1, keepdims=True)
        y = (y - mu) * jax.lax.rsqrt(var + 1e-5)
        y = y * g_ref[...] + beta_ref[...]
        o_ref[...] = y.astype(o_ref.dtype)


def linear_add_ln(x, w, b, residual, gamma, beta, out_dtype=jnp.bfloat16):
    M, K = x.shape
    H = w.shape[1]
    # Larger row tiles -> the (tk, H) weight panel is re-streamed fewer times.
    tm = _pick_tile(M, _PREF_TM_FUSED, 8)
    tk = _pick_tile(K, _PREF_TK, 128)
    return pl.pallas_call(
        _linear_res_ln_kernel,
        out_shape=jax.ShapeDtypeStruct((M, H), out_dtype),
        grid=(M // tm, K // tk),
        in_specs=[pl.BlockSpec((tm, tk), lambda i, k: (i, k)),
                  pl.BlockSpec((tk, H), lambda i, k: (k, 0)),
                  pl.BlockSpec((1, H), lambda i, k: (0, 0)),
                  pl.BlockSpec((tm, H), lambda i, k: (i, 0)),
                  pl.BlockSpec((1, H), lambda i, k: (0, 0)),
                  pl.BlockSpec((1, H), lambda i, k: (0, 0))],
        out_specs=pl.BlockSpec((tm, H), lambda i, k: (i, 0)),
        scratch_shapes=[pltpu.VMEM((tm, H), jnp.float32)],
        compiler_params=pltpu.CompilerParams(
            dimension_semantics=("parallel", "arbitrary"),
            vmem_limit_bytes=_VMEM_LIMIT),
    )(x, w, b.reshape(1, H).astype(jnp.float32), residual,
      gamma.reshape(1, H).astype(jnp.float32),
      beta.reshape(1, H).astype(jnp.float32))


def _ln_kernel(x_ref, g_ref, b_ref, o_ref):
    x = x_ref[...].astype(jnp.float32)
    mu = jnp.mean(x, axis=-1, keepdims=True)
    var = jnp.mean((x - mu) ** 2, axis=-1, keepdims=True)
    y = (x - mu) * jax.lax.rsqrt(var + 1e-5)
    o_ref[...] = (y * g_ref[...] + b_ref[...]).astype(o_ref.dtype)


def layernorm(x2d, gamma, beta, out_dtype=jnp.bfloat16):
    M, H = x2d.shape
    tm = _pick_tile(M, 512, 8)
    return pl.pallas_call(
        _ln_kernel,
        out_shape=jax.ShapeDtypeStruct((M, H), out_dtype),
        grid=(M // tm,),
        in_specs=[pl.BlockSpec((tm, H), lambda i: (i, 0)),
                  pl.BlockSpec((1, H), lambda i: (0, 0)),
                  pl.BlockSpec((1, H), lambda i: (0, 0))],
        out_specs=pl.BlockSpec((tm, H), lambda i: (i, 0)),
        compiler_params=pltpu.CompilerParams(
            dimension_semantics=("parallel",),
            vmem_limit_bytes=_VMEM_LIMIT),
    )(x2d, gamma.reshape(1, H).astype(jnp.float32),
      beta.reshape(1, H).astype(jnp.float32))


def _make_attn_kernel(num_heads, head_dim):
    """Per-batch attention over a fused [S, 3H] QKV slab, writing [S, H].

    The 1/sqrt(head_dim) scale is folded into the q columns of W_qkv at
    parameter-prep time.  The HBM writeback is the dense (S, H) block; only
    the per-head in-VMEM stores are sub-128-lane.
    """
    H = num_heads * head_dim

    def kernel(qkv_ref, bias_ref, o_ref):
        # qkv_ref: [S, 3H] bf16 ; bias_ref: [1, S] f32 additive key mask
        bias = bias_ref[...]
        for h in range(num_heads):
            a, b = h * head_dim, (h + 1) * head_dim
            q = qkv_ref[:, a:b]                        # [S, d]  (pre-scaled)
            k = qkv_ref[:, H + a:H + b]                # [S, d]
            v = qkv_ref[:, 2 * H + a:2 * H + b]        # [S, d]
            # contract on head_dim (no pre-transposed K needed)
            s = jax.lax.dot_general(q, k,
                                    dimension_numbers=(((1,), (1,)), ((), ())),
                                    preferred_element_type=jnp.float32)
            s = s + bias                               # [1,S] broadcasts
            s = s - jnp.max(s, axis=-1, keepdims=True)
            p = jnp.exp(s)
            p = p * pl.reciprocal(jnp.sum(p, axis=-1, keepdims=True),
                                  approx=True)
            ctx = jnp.dot(p.astype(jnp.bfloat16), v,
                          preferred_element_type=jnp.float32)
            o_ref[:, a:b] = ctx.astype(o_ref.dtype)
    return kernel


def mha_attention(qkv_3d, attn_bias, num_heads):
    """qkv_3d: [B, S, 3H] bf16 (q|k|v); attn_bias: [B, 1, S] f32 additive."""
    B, S, threeH = qkv_3d.shape
    H = threeH // 3
    d = H // num_heads
    return pl.pallas_call(
        _make_attn_kernel(num_heads, d),
        out_shape=jax.ShapeDtypeStruct((B, S, H), jnp.bfloat16),
        grid=(B,),
        in_specs=[pl.BlockSpec((None, S, threeH), lambda b: (b, 0, 0)),
                  pl.BlockSpec((None, 1, S), lambda b: (b, 0, 0))],
        out_specs=pl.BlockSpec((None, S, H), lambda b: (b, 0, 0)),
        compiler_params=pltpu.CompilerParams(
            dimension_semantics=("parallel",),
            vmem_limit_bytes=_VMEM_LIMIT),
    )(qkv_3d, attn_bias)


def _gru_kernel(gi_ref, h0_ref, whh_ref, bhh_ref, out_ref, hn_ref, h_sc):
    # gi: [T, 3H] precomputed x @ W_ih + b_ih (input projection hoisted out)
    # h0: [1, H]; whh: [H, 3H] bf16; bhh: [1, 3H]; gate order r|z|n (PyTorch)
    H = h0_ref.shape[-1]
    T = gi_ref.shape[0]
    h_sc[...] = h0_ref[...].astype(jnp.bfloat16)   # recurrent state kept bf16

    def body(t, carry):
        gi = gi_ref[pl.ds(t, 1), :]                              # [1, 3H] f32
        h_b = h_sc[...]                                          # [1, H] bf16
        gh = jnp.dot(h_b, whh_ref[...],
                     preferred_element_type=jnp.float32) + bhh_ref[...]
        r = jax.nn.sigmoid(gi[:, 0:H] + gh[:, 0:H])
        z = jax.nn.sigmoid(gi[:, H:2 * H] + gh[:, H:2 * H])
        n = jnp.tanh(gi[:, 2 * H:3 * H] + r * gh[:, 2 * H:3 * H])
        h_new = (1.0 - z) * n + z * h_b.astype(jnp.float32)
        h_sc[...] = h_new.astype(jnp.bfloat16)
        out_ref[pl.ds(t, 1), :] = h_new            # direct per-step row store
        return carry

    jax.lax.fori_loop(0, T, body, 0)
    hn_ref[...] = h_sc[...].astype(jnp.float32)


def gru(gi_all, h0, w_hh_t, b_hh):
    T, G = gi_all.shape
    H = G // 3
    return pl.pallas_call(
        _gru_kernel,
        out_shape=(jax.ShapeDtypeStruct((T, H), jnp.float32),
                   jax.ShapeDtypeStruct((1, H), jnp.float32)),
        grid=(1,),
        in_specs=[pl.BlockSpec((T, G), lambda i: (0, 0)),
                  pl.BlockSpec((1, H), lambda i: (0, 0)),
                  pl.BlockSpec((H, G), lambda i: (0, 0)),
                  pl.BlockSpec((1, G), lambda i: (0, 0))],
        out_specs=(pl.BlockSpec((T, H), lambda i: (0, 0)),
                   pl.BlockSpec((1, H), lambda i: (0, 0))),
        scratch_shapes=[pltpu.VMEM((1, H), jnp.bfloat16)],
        compiler_params=pltpu.CompilerParams(vmem_limit_bytes=_VMEM_LIMIT),
    )(gi_all, h0, w_hh_t, b_hh.reshape(1, G).astype(jnp.float32))


def _dec_cls_kernel(x_ref, dw_ref, db_ref, cw_ref, cb_ref, lat_ref, cls_ref):
    # decoder: Linear(H, F) + ELU, classifier: Linear(F, L) — fused (tiny).
    y = jnp.dot(x_ref[...], dw_ref[...],
                preferred_element_type=jnp.float32) + db_ref[...]
    y = jnp.where(y > 0.0, y, jnp.expm1(jnp.minimum(y, 0.0)))      # ELU
    lat_ref[...] = y
    cls_ref[...] = (jnp.dot(y.astype(jnp.bfloat16), cw_ref[...],
                            preferred_element_type=jnp.float32) + cb_ref[...])


def decoder_classifier(x, dw, db, cw, cb):
    T, H = x.shape
    F = dw.shape[1]
    L = cw.shape[1]
    return pl.pallas_call(
        _dec_cls_kernel,
        out_shape=(jax.ShapeDtypeStruct((T, F), jnp.float32),
                   jax.ShapeDtypeStruct((T, L), jnp.float32)),
        grid=(1,),
        in_specs=[pl.BlockSpec((T, H), lambda i: (0, 0)),
                  pl.BlockSpec((H, F), lambda i: (0, 0)),
                  pl.BlockSpec((1, F), lambda i: (0, 0)),
                  pl.BlockSpec((F, L), lambda i: (0, 0)),
                  pl.BlockSpec((1, L), lambda i: (0, 0))],
        out_specs=(pl.BlockSpec((T, F), lambda i: (0, 0)),
                   pl.BlockSpec((T, L), lambda i: (0, 0))),
        compiler_params=pltpu.CompilerParams(vmem_limit_bytes=_VMEM_LIMIT),
    )(x, dw, db.reshape(1, F).astype(jnp.float32),
      cw, cb.reshape(1, L).astype(jnp.float32))


# ----------------------------------------------------------------------------
# Parameters (deterministic synthetic init) and forward pass (glue in JAX)
# ----------------------------------------------------------------------------

def init_params(key, cfg):
    H = cfg["hidden_size"]
    I = cfg["intermediate_size"]
    F = cfg["feature_dimension"]
    d = H // cfg["num_heads"]
    keys = iter(jax.random.split(key, 256))

    def nrm(shape, scale=0.02, dtype=jnp.bfloat16):
        return (scale * jax.random.normal(next(keys), shape)).astype(dtype)

    def zeros(shape):
        return jnp.zeros(shape, jnp.float32)

    params = {
        "word_emb": nrm((cfg["vocab_size"], H), dtype=jnp.float32),
        "pos_emb": nrm((cfg["max_position"], H), dtype=jnp.float32),
        "type_emb": nrm((cfg["type_vocab"], H), dtype=jnp.float32),
        "emb_ln_g": jnp.ones((H,), jnp.float32),
        "emb_ln_b": zeros((H,)),
        "layers": [],
        # GRU (PyTorch layout transposed for x @ W): [H, 3H], gates r|z|n
        "gru_w_ih_t": nrm((H, 3 * H), 0.1),
        "gru_w_hh_t": nrm((H, 3 * H), 0.1),
        "gru_b_ih": zeros((3 * H,)),
        "gru_b_hh": zeros((3 * H,)),
        # decoder: Linear(H, F) + ELU  (frozen in torch; irrelevant for fwd)
        "dec_w": nrm((H, F), 0.1),
        "dec_b": zeros((F,)),
        # classifier: Linear(F, label_num)
        "cls_w": nrm((F, cfg["label_num"]), 0.1),
        "cls_b": zeros((cfg["label_num"],)),
    }
    q_scale = 1.0 / math.sqrt(d)
    for _ in range(cfg["num_layers"]):
        # fused QKV weight [H, 3H] (q | k | v); 1/sqrt(d) folded into q slice.
        # NOTE: when porting real weights, apply the same q-column scaling.
        w_qkv = nrm((H, 3 * H))
        w_qkv = w_qkv.at[:, :H].multiply(q_scale)
        b_qkv = zeros((3 * H,)).at[:H].multiply(q_scale)
        params["layers"].append({
            "w_qkv": w_qkv, "b_qkv": b_qkv,
            "wo": nrm((H, H)), "bo": zeros((H,)),
            "ln1_g": jnp.ones((H,), jnp.float32), "ln1_b": zeros((H,)),
            "w1": nrm((H, I)), "b1": zeros((I,)),
            "w2": nrm((I, H)), "b2": zeros((H,)),
            "ln2_g": jnp.ones((H,), jnp.float32), "ln2_b": zeros((H,)),
        })
    return params


def speaker_preclassification_forward(params, input_ids, attention_mask,
                                      cls_idx, cfg, rnn_last_hidden=None):
    B, S = input_ids.shape
    H = cfg["hidden_size"]
    nH = cfg["num_heads"]

    # --- RoBERTa embeddings (gathers = XLA glue) ---------------------------
    am_i = attention_mask.astype(jnp.int32)
    # RoBERTa position ids derived from non-pad tokens (padding_idx = 1)
    pos_ids = jnp.cumsum(am_i, axis=1) * am_i + 1            # [B, S]
    token_type_ids = jnp.zeros((B, S), jnp.int32)
    x = (params["word_emb"][input_ids]
         + params["pos_emb"][pos_ids]
         + params["type_emb"][token_type_ids])
    x2d = layernorm(x.reshape(B * S, H),
                    params["emb_ln_g"], params["emb_ln_b"])   # bf16 [B*S, H]

    # additive attention bias [B, 1, S]  (no [B,S,S] materialization)
    attn_bias = ((1.0 - attention_mask.astype(jnp.float32))
                 * -1e9).reshape(B, 1, S)

    # --- transformer encoder layers ----------------------------------------
    for layer in params["layers"]:
        qkv = linear(x2d, layer["w_qkv"], layer["b_qkv"])     # [B*S, 3H] bf16
        # free reshape (no transpose): heads are sliced inside the kernel
        ctx = mha_attention(qkv.reshape(B, S, 3 * H), attn_bias, nH)  # [B,S,H]

        # attention output projection fused with residual-add + LayerNorm
        x2d = linear_add_ln(ctx.reshape(B * S, H), layer["wo"], layer["bo"],
                            x2d, layer["ln1_g"], layer["ln1_b"])

        ffn = linear(x2d, layer["w1"], layer["b1"], act="gelu")
        # FFN down projection fused with residual-add + LayerNorm
        x2d = linear_add_ln(ffn, layer["w2"], layer["b2"],
                            x2d, layer["ln2_g"], layer["ln2_b"])

    last_hidden = x2d.reshape(B, S, H)

    # --- cls gather + GRU + decoder + classifier ----------------------------
    cls_idx = jnp.asarray(cls_idx, dtype=jnp.int32)
    cls_hidden = last_hidden[0][cls_idx]                     # [num_cls, H] bf16

    if rnn_last_hidden is None:
        rnn_last_hidden = jnp.zeros((1, H), jnp.float32)

    # GRU input projection hoisted out of the recurrence: one batched matmul
    gi_all = linear(cls_hidden, params["gru_w_ih_t"], params["gru_b_ih"],
                    out_dtype=jnp.float32)                   # [num_cls, 3H]
    rnn_out, rnn_h = gru(gi_all, rnn_last_hidden,
                         params["gru_w_hh_t"], params["gru_b_hh"])

    # torch: rnn_out[-1, :, :] with batch=1, batch_first=True == all timesteps
    seq_feature = rnn_out.astype(jnp.bfloat16)               # [num_cls, H]
    latent_features, classification_result = decoder_classifier(
        seq_feature, params["dec_w"], params["dec_b"],
        params["cls_w"], params["cls_b"])
    return latent_features, classification_result, rnn_h


# ----------------------------------------------------------------------------

if __name__ == "__main__":
    cfg = dict(vocab_size=100, hidden_size=32, num_heads=4,
               intermediate_size=64, num_layers=2, feature_dimension=16,
               label_num=3, max_position=64, type_vocab=2)

    root = jax.random.PRNGKey(0)
    pkey, dkey = jax.random.split(root)
    params = init_params(pkey, cfg)

    B, S = 2, 8
    input_ids = jax.random.randint(dkey, (B, S), 0, cfg["vocab_size"],
                                   dtype=jnp.int32)
    attention_mask = jnp.ones((B, S), jnp.int32)
    cls_idx = (0, 3)   # two "CLS" positions in utterance 0

    latent, logits, rnn_h = speaker_preclassification_forward(
        params, input_ids, attention_mask, cls_idx, cfg)
    jax.block_until_ready((latent, logits, rnn_h))

    assert latent.shape == (len(cls_idx), cfg["feature_dimension"])
    assert logits.shape == (len(cls_idx), cfg["label_num"])
    assert rnn_h.shape == (1, cfg["hidden_size"])
    assert jnp.all(jnp.isfinite(latent)) and jnp.all(jnp.isfinite(logits))
    print("KERNEL_OK")
</pallas_src>

<mosaic_0001>
module attributes {stable_mosaic.version = 11 : i64} {
  func.func @_ln_kernel(%arg0: i32, %arg1: memref<16x32xf32, #tpu.memory_space<vmem>>, %arg2: memref<1x32xf32, #tpu.memory_space<vmem>>, %arg3: memref<1x32xf32, #tpu.memory_space<vmem>>, %arg4: memref<16x32xbf16, #tpu.memory_space<vmem>>) attributes {dimension_semantics = [#tpu.dimension_semantics<parallel>], iteration_bounds = array<i64: 1>, scalar_prefetch = 0 : i64, scratch_operands = 0 : i64, tpu.core_type = #tpu.core_type<tc>, window_params = [{transform_indices = @transform_0, window_bounds = array<i64: 16, 32>}, {pipeline_mode = #tpu.pipeline_mode<synchronous>, transform_indices = @transform_1, window_bounds = array<i64: 1, 32>}, {pipeline_mode = #tpu.pipeline_mode<synchronous>, transform_indices = @transform_2, window_bounds = array<i64: 1, 32>}, {transform_indices = @transform_3, window_bounds = array<i64: 16, 32>}]} {
    %c0 = arith.constant 0 : index
    %c0_0 = arith.constant 0 : index
    %0 = vector.load %arg1[%c0, %c0_0] : memref<16x32xf32, #tpu.memory_space<vmem>>, vector<16x32xf32>
    %cst = arith.constant dense<0.000000e+00> : vector<16xf32>
    %1 = vector.multi_reduction <add>, %0, %cst [1] : vector<16x32xf32> to vector<16xf32>
    %2 = vector.shape_cast %1 : vector<16xf32> to vector<16x1xf32>
    %cst_1 = arith.constant 3.200000e+01 : f32
    %3 = vector.broadcast %cst_1 : f32 to vector<16x1xf32>
    %4 = arith.divf %2, %3 : vector<16x1xf32>
    %5 = vector.broadcast %4 : vector<16x1xf32> to vector<16x32xf32>
    %6 = arith.subf %0, %5 : vector<16x32xf32>
    %7 = arith.mulf %6, %6 : vector<16x32xf32>
    %cst_2 = arith.constant dense<0.000000e+00> : vector<16xf32>
    %8 = vector.multi_reduction <add>, %7, %cst_2 [1] : vector<16x32xf32> to vector<16xf32>
    %9 = vector.shape_cast %8 : vector<16xf32> to vector<16x1xf32>
    %cst_3 = arith.constant 3.200000e+01 : f32
    %10 = vector.broadcast %cst_3 : f32 to vector<16x1xf32>
    %11 = arith.divf %9, %10 : vector<16x1xf32>
    %12 = vector.broadcast %4 : vector<16x1xf32> to vector<16x32xf32>
    %13 = arith.subf %0, %12 : vector<16x32xf32>
    %cst_4 = arith.constant 9.99999974E-6 : f32
    %14 = vector.broadcast %cst_4 : f32 to vector<16x1xf32>
    %15 = arith.addf %11, %14 : vector<16x1xf32>
    %16 = math.rsqrt %15 : vector<16x1xf32>
    %17 = vector.broadcast %16 : vector<16x1xf32> to vector<16x32xf32>
    %18 = arith.mulf %13, %17 : vector<16x32xf32>
    %c0_5 = arith.constant 0 : index
    %c0_6 = arith.constant 0 : index
    %19 = vector.load %arg2[%c0_5, %c0_6] : memref<1x32xf32, #tpu.memory_space<vmem>>, vector<1x32xf32>
    %20 = vector.broadcast %19 : vector<1x32xf32> to vector<16x32xf32>
    %21 = arith.mulf %18, %20 : vector<16x32xf32>
    %c0_7 = arith.constant 0 : index
    %c0_8 = arith.constant 0 : index
    %22 = vector.load %arg3[%c0_7, %c0_8] : memref<1x32xf32, #tpu.memory_space<vmem>>, vector<1x32xf32>
    %23 = vector.broadcast %22 : vector<1x32xf32> to vector<16x32xf32>
    %24 = arith.addf %21, %23 : vector<16x32xf32>
    %25 = arith.truncf %24 : vector<16x32xf32> to vector<16x32xbf16>
    %c0_9 = arith.constant 0 : index
    %c0_10 = arith.constant 0 : index
    %26 = vector.load %arg4[%c0_9, %c0_10] : memref<16x32xbf16, #tpu.memory_space<vmem>>, vector<16x32xbf16>
    tpu.vector_store %arg4[%c0_9, %c0_10], %25 {strides = array<i32>} : memref<16x32xbf16, #tpu.memory_space<vmem>>, vector<16x32xbf16>,
    return
  }
  func.func @transform_0(%arg0: i32) -> (i32, i32) {
    %c0_i32 = arith.constant 0 : i32
    %c0_i32_0 = arith.constant 0 : i32
    return %arg0, %c0_i32 : i32, i32
  }
  func.func @transform_1(%arg0: i32) -> (i32, i32) {
    %c0_i32 = arith.constant 0 : i32
    %c0_i32_0 = arith.constant 0 : i32
    %c0_i32_1 = arith.constant 0 : i32
    return %c0_i32, %c0_i32_0 : i32, i32
  }
  func.func @transform_2(%arg0: i32) -> (i32, i32) {
    %c0_i32 = arith.constant 0 : i32
    %c0_i32_0 = arith.constant 0 : i32
    %c0_i32_1 = arith.constant 0 : i32
    return %c0_i32, %c0_i32_0 : i32, i32
  }
  func.func @transform_3(%arg0: i32) -> (i32, i32) {
    %c0_i32 = arith.constant 0 : i32
    %c0_i32_0 = arith.constant 0 : i32
    return %arg0, %c0_i32 : i32, i32
  }
}

</mosaic_0001>

<llo_original>
// kernel: tpu_custom_call.1
$region0: #{tpu_custom_call.1}
  #allocation0 [shape = 'u32[]', space=smem, size = 0x4, offset = 0x4, fixed_abs, tag = 'smem constant byte address 0x4 - core index']
  #allocation1 [shape = 'u32[144,128]{1,0:T(1,128)}', space=vmem, size = 0x12000, scoped, tag = 'internal scratch']
  %s0 = inlined_call_operand.hbm [shape: f32[16,32], index: 0, kind: input, shape index: {}]
  %s1 = inlined_call_operand.vmem [shape: f32[1,32], index: 1, kind: input, shape index: {}]
  %s2 = inlined_call_operand.vmem [shape: f32[1,32], index: 2, kind: input, shape index: {}]
  %s3 = inlined_call_operand.hbm [shape: bf16[16,32], index: 3, kind: output, shape index: {}]
  %s4 = sld [smem:[#allocation0]]
  $region26: #{tpu_custom_call.1} parent=0
    _
  %s6 = ssub.s32 1, %s4
  %s7 = scalar_select 0, %s6, %s4
  $region1: #{tpu_custom_call.1} parent=0
    #allocation2 [shape = 'u8[8192]{0}', space=vmem, size = 0x2000, scoped, tag = 'input window, operand 0, single buffered']
    #allocation3 [shape = 's32[1]{0}', space=sflag, size = 0x4, scoped, tag = 'scoped memory for tpu_custom_call.1']
    #allocation4 [shape = 's32[1]{0}', space=sflag, size = 0x4, scoped, tag = 'scoped memory for tpu_custom_call.1']
    #allocation5 [shape = 'u8[4096]{0}', space=vmem, size = 0x1000, scoped, tag = 'output window, operand 0, single buffered']
    %8 = vsyncpa [#allocation3], 0
    %9 = vsyncpa [#allocation4], 0
    // Predicated region
    $region2: #{tpu_custom_call.1} parent=1 // pred_check
      _
    $region3: #{tpu_custom_call.1} parent=1 // pred_check_branch
      %11 = sbr.rel (0) target = $region5
    $region4: #{tpu_custom_call.1} parent=1 // pred_region
      %s13 = ssub.s32 256, 256
      %14 = vsyncadd [#allocation3], %s13
      %s15 = sshll.u32 [#allocation2], 4
      %s16 = int_to_ptr.vmem [resolvable:$true] %s15
      %21 = dma.hbm_to_vmem [thread:$0]  %s0, 256, %s16, [#allocation3], 128, 128, 8
    $region5: #{tpu_custom_call.1} parent=1 // pred_fallthru
      _
    // Predicated region
    $region6: #{tpu_custom_call.1} parent=1 // pred_check
      _
    $region7: #{tpu_custom_call.1} parent=1 // pred_check_branch
      %23 = sbr.rel (0) target = $region9
    $region8: #{tpu_custom_call.1} parent=1 // pred_region
      _
    $region9: #{tpu_custom_call.1} parent=1 // pred_fallthru
      _
    // Predicated region
    $region10: #{tpu_custom_call.1} parent=1 // pred_check
      _
    $region11: #{tpu_custom_call.1} parent=1 // pred_check_branch
      %25 = sbr.rel (0) target = $region13
    $region12: #{tpu_custom_call.1} parent=1 // pred_region
      _
    $region13: #{tpu_custom_call.1} parent=1 // pred_fallthru
      _
    // Predicated region
    $region14: #{tpu_custom_call.1} parent=1 // pred_check
      _
    $region15: #{tpu_custom_call.1} parent=1 // pred_check_branch
      %27 = sbr.rel (0) target = $region17
    $region16: #{tpu_custom_call.1} parent=1 // pred_region
      %28 = dma.done [#allocation3], 256
    $region17: #{tpu_custom_call.1} parent=1 // pred_fallthru
      _
    %v29 = vld [vmem:[#allocation2] sm:$0xff]
    %v30 = vld [vmem:[#allocation2 + $0x8] sm:$0xff]
    %vm31 = vcmask 261120
    %v32 = vsel %vm31, %v29, 0.0
    %33 = vadd.xlane.f32.xlu0 %v32
    %v34 = vpop.xlane.xlu0 %33
    %v35 = vsel %vm31, %v30, 0.0
    %36 = vadd.xlane.f32.xlu0 %v35
    %v37 = vpop.xlane.xlu0 %36
    %v38 = vrcp.pop 32.0
    %v39 = vmul.f32 %v34, %v38
    %v40 = vmul.f32 %v37, %v38
    %v41 = vsub.f32 %v29, %v39
    %v42 = vsub.f32 %v30, %v40
    %v43 = vmul.f32 %v41, %v41
    %v44 = vmul.f32 %v42, %v42
    %v45 = vsel %vm31, %v43, 0.0
    %46 = vadd.xlane.f32.xlu0 %v45
    %v47 = vpop.xlane.xlu0 %46
    %v48 = vsel %vm31, %v44, 0.0
    %49 = vadd.xlane.f32.xlu0 %v48
    %v50 = vpop.xlane.xlu0 %49
    %v51 = vmul.f32 %v47, %v38
    %v52 = vmul.f32 %v50, %v38
    %v53 = vadd.f32 %v51, 1e-05
    %v54 = vadd.f32 %v52, 1e-05
    %v55 = vrsqrt.pop %v53
    %v56 = vrsqrt.pop %v54
    %v57 = vmul.f32 %v41, %v55
    %v58 = vmul.f32 %v42, %v56
    %v59 = vld [vmem:[%s1] sm:$0x1]
    %v61 = vlaneseq
    %v62 = vshrl.u32 %v61, 7
    %v63 = vsub.s32 0, %v62
    %v64 = vrot.slane %v59, %v63
    %v66 = vmul.f32 %v57, %v64
    %v67 = vmul.f32 %v58, %v64
    %v68 = vld [vmem:[%s2] sm:$0x1]
    %v70 = vlaneseq
    %v71 = vshrl.u32 %v70, 7
    %v72 = vsub.s32 0, %v71
    %v73 = vrot.slane %v68, %v72
    %v75 = vadd.f32 %v66, %v73
    %v76 = vadd.f32 %v67, %v73
    %v77 = vpack.c.bf16 %v76, %v75
    %v79 = vunpack.c.l.b16 %v77
    %v80 = vunpack.c.h.b16 %v77
    %v81 = vpack.c.b16 %v79, %v79
    %v82 = vpack.c.b16 %v80, %v80
    %vm85 = vcmask 257024
    %86 = vst.msk [vmem:[#allocation5] sm:$0xf] %vm85, %v81
    %87 = vst.msk [vmem:[#allocation5 + $0x4] sm:$0xf] %vm85, %v82
    // Predicated region
    $region18: #{tpu_custom_call.1} parent=1 // pred_check
      _
    $region19: #{tpu_custom_call.1} parent=1 // pred_check_branch
      %89 = sbr.rel (0) target = $region21
    $region20: #{tpu_custom_call.1} parent=1 // pred_region
      %s91 = ssub.s32 128, 128
      %92 = vsyncadd [#allocation4], %s91
      %s93 = sshll.u32 [#allocation5], 4
      %s94 = int_to_ptr.vmem [resolvable:$true] %s93
      %99 = dma.vmem_to_hbm [thread:$0]  %s94, 128, %s3, [#allocation4], 64, 64, 4
    $region21: #{tpu_custom_call.1} parent=1 // pred_fallthru
      _
    // Predicated region
    $region22: #{tpu_custom_call.1} parent=1 // pred_check
      _
    $region23: #{tpu_custom_call.1} parent=1 // pred_check_branch
      %101 = sbr.rel (0) target = $region25
    $region24: #{tpu_custom_call.1} parent=1 // pred_region
      %102 = dma.done [#allocation4], 128
    $region25: #{tpu_custom_call.1} parent=1 // pred_fallthru
      _
    %103 = vsyncpa [#allocation3], 1
    %104 = vsyncpa [#allocation4], 1

</llo_original>
